<compile_context>
chip_gen: v5e
topology: v5e:2x2
jax: 0.10.0
libtpu: 0.0.40
codegen_flags: <defaults>
</compile_context>

<pallas_src>
import numpy as np
import jax
import jax.numpy as jnp
from jax.experimental import pallas as pl
from jax.experimental.pallas import tpu as pltpu

NUM_CLASSES = 10
LANE = 128                     # lane width / padding granularity
MAT_DTYPE = jnp.bfloat16       # MXU operand dtype; accumulation is f32
NEG_MASK = -1e30               # folded softmax mask for padded logit lanes


def _round_up(n, m):
    return (n + m - 1) // m * m


def _bf16_valu_supported():
    """bf16 elementwise only on chips with a bf16 VPU (v6e/v7x); f32 elsewhere."""
    try:
        kind = jax.devices()[0].device_kind.lower()
    except Exception:
        return False
    for old in ("v2", "v3", "v4", "v5"):   # v5e/v5p and older: no bf16 VALU
        if old in kind:
            return False
    return True


# ---------------- Pallas kernel: whole forward pass, VMEM-resident -------------

def make_kernel(bf16_elementwise):
    if bf16_elementwise:
        def act(z):                                   # z: f32 MXU accumulator
            return jnp.maximum(z.astype(MAT_DTYPE), 0)        # bf16 ReLU (v6e/v7x)
    else:
        def act(z):
            return jnp.maximum(z, 0.0).astype(MAT_DTYPE)      # f32 ReLU (v5e-safe)

    def kernel(x_ref, m1_ref, m2_ref, ms_ref, o_ref):
        """x_ref: (tile_b, 128) bf16 with a constant-1 bias lane in column 127.
        m1_ref: (128, 256), m2_ref: (256, 128), ms_ref: (5, 128, 128) bf16 dense
        layer matrices with biases folded in; fc1 (ms_ref[4]) also carries the
        -1e30 softmax mask on its padded output columns.
        o_ref: (tile_b, 128) f32 softmax output (padded lanes are 0)."""
        h = x_ref[...]                                                    # bf16
        h = act(jnp.dot(h, m1_ref[...], preferred_element_type=jnp.float32))
        h = act(jnp.dot(h, m2_ref[...], preferred_element_type=jnp.float32))
        for l in range(4):                        # conv2, conv2_s, conv3, conv3_s
            h = act(jnp.dot(h, ms_ref[l], preferred_element_type=jnp.float32))
        logits = jnp.dot(h, ms_ref[4], preferred_element_type=jnp.float32)  # fc1
        # Padded lanes already hold ~-1e30 (mask folded into fc1) -> exp() == 0.
        m = jnp.max(logits, axis=-1, keepdims=True)
        e = jnp.exp(logits - m)
        denom = jnp.sum(e, axis=-1, keepdims=True)
        o_ref[...] = e * pl.reciprocal(denom)     # exact reciprocal (approx=False)

    return kernel


# ---------------- One-time host-side weight repack ------------------------------

def _conv_to_dense(w, b, h_in, w_in, stride, pad):
    """Exact dense-matrix form of a Conv2d over a fixed h_in x w_in input.
    Rows/cols are NCHW-flattened (c, h, w) input/output features."""
    c_out, c_in, kh, kw = w.shape
    h_out = (h_in + 2 * pad - kh) // stride + 1
    w_out = (w_in + 2 * pad - kw) // stride + 1
    mat = np.zeros((c_in * h_in * w_in, c_out * h_out * w_out), np.float32)
    for co in range(c_out):
        for ho in range(h_out):
            for wo in range(w_out):
                col = (co * h_out + ho) * w_out + wo
                for ci in range(c_in):
                    for i in range(kh):
                        hi = ho * stride + i - pad
                        if hi < 0 or hi >= h_in:
                            continue
                        for j in range(kw):
                            wi = wo * stride + j - pad
                            if wi < 0 or wi >= w_in:
                                continue
                            mat[(ci * h_in + hi) * w_in + wi, col] = w[co, ci, i, j]
    bias = np.repeat(b, h_out * w_out)                        # (co, ho, wo) ordering
    return mat, bias, h_out, w_out


_LAYER_SPECS = (  # (name, stride, pad)
    ("conv1", 1, 2), ("conv1_s", 2, 2),
    ("conv2", 1, 1), ("conv2_s", 2, 1),
    ("conv3", 1, 1), ("conv3_s", 2, 1),
)


def repack_params(params, h_in=8, w_in=8):
    """Convert conv/fc weights to 128-padded dense matmul operands (run once).
    Biases are folded into the last (padded) row of each matrix and consumed via a
    constant-1 lane that is propagated layer-to-layer; the softmax padding mask is
    folded into fc1's padded output columns."""
    dense = []
    h, w = h_in, w_in
    for name, stride, pad in _LAYER_SPECS:
        wgt, bias = params[name]
        mat, bvec, h, w = _conv_to_dense(np.asarray(wgt), np.asarray(bias),
                                         h, w, stride, pad)
        dense.append((mat, bvec))
    wf, bf = params["fc1"]
    dense.append((np.asarray(wf).T.copy(), np.asarray(bf)))   # Linear: y = x @ W.T + b

    mats = []
    n = len(dense)
    for idx, (mat, bvec) in enumerate(dense):
        rows = _round_up(mat.shape[0], LANE)
        cols = _round_up(mat.shape[1], LANE)
        assert rows - 1 >= mat.shape[0], "need a padded input row for the bias lane"
        mp = np.zeros((rows, cols), np.float32)
        mp[: mat.shape[0], : mat.shape[1]] = mat
        mp[rows - 1, : bvec.shape[0]] = bvec                  # bias via constant-1 lane
        if idx < n - 1:
            mp[rows - 1, cols - 1] = 1.0                      # keep the 1-lane alive
        else:
            mp[rows - 1, bvec.shape[0]:] = NEG_MASK           # softmax mask (fc1 pad cols)
        mats.append(mp)

    m1 = jnp.asarray(mats[0], dtype=MAT_DTYPE)                # (128, 256)  conv1
    m2 = jnp.asarray(mats[1], dtype=MAT_DTYPE)                # (256, 128)  conv1_s
    mstack = jnp.asarray(np.stack(mats[2:]), dtype=MAT_DTYPE)  # (5, 128, 128) rest
    return m1, m2, mstack


# ---------------- Forward wrapper (single pallas_call) --------------------------

def simple_cnn_forward(weights, x_nchw):
    m1, m2, mstack = weights
    B = x_nchw.shape[0]
    in_pad = m1.shape[0]                    # 128
    out_pad = mstack.shape[2]               # 128

    # NCHW flatten -> (B, 64); pad lanes; constant-1 bias lane; bf16 input DMA.
    x2d = x_nchw.reshape(B, -1).astype(jnp.float32)
    x2d = jnp.pad(x2d, ((0, 0), (0, in_pad - x2d.shape[1])))
    x2d = x2d.at[:, in_pad - 1].set(1.0)                      # constant-1 bias lane
    x2d = x2d.astype(m1.dtype)

    # Pad batch to a multiple of 16 -> full-sublane bf16 blocks, unmasked stores.
    B_pad = _round_up(max(B, 1), 16)
    if B_pad != B:
        x2d = jnp.pad(x2d, ((0, B_pad - B), (0, 0)))

    # Batch tile: large (amortize per-step overhead, fill the 256-wide MXU) but
    # at least 2 grid steps when the batch allows so v7x shards across both TCs.
    tile_b = min(B_pad, 512)
    if B_pad >= 32:
        tile_b = min(tile_b, _round_up(pl.cdiv(B_pad, 2), 16))
    grid = (pl.cdiv(B_pad, tile_b),)

    flops = 2 * B_pad * (m1.shape[0] * m1.shape[1]
                         + m2.shape[0] * m2.shape[1]
                         + mstack.shape[0] * mstack.shape[1] * mstack.shape[2])
    bytes_accessed = (B_pad * in_pad * 2 + B_pad * out_pad * 4
                      + 2 * (m1.size + m2.size + mstack.size))
    cost = pl.CostEstimate(flops=int(flops),
                           transcendentals=int(B_pad * out_pad),
                           bytes_accessed=int(bytes_accessed))

    out = pl.pallas_call(
        make_kernel(_bf16_valu_supported()),
        out_shape=jax.ShapeDtypeStruct((B_pad, out_pad), jnp.float32),
        grid=grid,
        in_specs=[
            pl.BlockSpec((tile_b, in_pad), lambda i: (i, 0)),      # batch-tiled input
            pl.BlockSpec(m1.shape, lambda i: (0, 0)),              # VMEM-resident weights
            pl.BlockSpec(m2.shape, lambda i: (0, 0)),
            pl.BlockSpec(mstack.shape, lambda i: (0, 0, 0)),
        ],
        out_specs=pl.BlockSpec((tile_b, out_pad), lambda i: (i, 0)),
        compiler_params=pltpu.CompilerParams(
            dimension_semantics=("parallel",)),                    # v7x: 2 TCs on batch
        cost_estimate=cost,
    )(x2d, m1, m2, mstack)
    return out[:B, :NUM_CLASSES]


# ---------------- Deterministic parameter init (PyTorch-default-style uniform) --

def init_params(key):
    def conv_p(k, cout, cin, ksz):
        k1, k2 = jax.random.split(k)
        bound = 1.0 / jnp.sqrt(float(cin * ksz * ksz))
        w = jax.random.uniform(k1, (cout, cin, ksz, ksz), jnp.float32, -bound, bound)
        b = jax.random.uniform(k2, (cout,), jnp.float32, -bound, bound)
        return w, b

    keys = jax.random.split(key, 7)
    params = {
        "conv1":   conv_p(keys[0], 3, 1, 5),
        "conv1_s": conv_p(keys[1], 3, 3, 5),
        "conv2":   conv_p(keys[2], 6, 3, 3),
        "conv2_s": conv_p(keys[3], 6, 6, 3),
        "conv3":   conv_p(keys[4], 10, 6, 3),
        "conv3_s": conv_p(keys[5], 10, 10, 3),
    }
    k1, k2 = jax.random.split(keys[6])
    bound = 1.0 / jnp.sqrt(10.0)
    params["fc1"] = (
        jax.random.uniform(k1, (10, 10), jnp.float32, -bound, bound),
        jax.random.uniform(k2, (10,), jnp.float32, -bound, bound),
    )
    return params


# ---------------- Pure-JAX reference (validation only) --------------------------

def simple_cnn_reference(params, x):
    def conv(x, w, b, stride, pad):
        y = jax.lax.conv_general_dilated(
            x, w, window_strides=(stride, stride),
            padding=((pad, pad), (pad, pad)),
            dimension_numbers=("NCHW", "OIHW", "NCHW"))
        return jax.nn.relu(y + b.reshape(1, -1, 1, 1))

    x = conv(x, *params["conv1"], 1, 2)
    x = conv(x, *params["conv1_s"], 2, 2)
    x = conv(x, *params["conv2"], 1, 1)
    x = conv(x, *params["conv2_s"], 2, 1)
    x = conv(x, *params["conv3"], 1, 1)
    x = conv(x, *params["conv3_s"], 2, 1)
    x = x.reshape(x.shape[0], -1)
    w, b = params["fc1"]
    return jax.nn.softmax(x @ w.T + b, axis=-1)


if __name__ == "__main__":
    key = jax.random.PRNGKey(0)
    kx, kp = jax.random.split(key)
    # fc1 expects 10 flattened features => 10 * (H/8) * (W/8) = 10 => 8x8 input
    x = jax.random.normal(kx, (2, 1, 8, 8), jnp.float32)
    params = init_params(kp)
    weights = repack_params(params)           # one-time host-side weight repack

    fwd = jax.jit(simple_cnn_forward)
    out = jax.block_until_ready(fwd(weights, x))

    assert out.shape == (2, NUM_CLASSES)
    assert bool(jnp.all(jnp.isfinite(out)))
    # softmax rows should sum to ~1 (exact reciprocal keeps this within f32 rounding)
    assert bool(jnp.allclose(jnp.sum(out, axis=-1), 1.0, atol=1e-5))
    # match the f32 XLA reference (bf16 MXU operands + bf16-folded biases, f32 accumulate)
    ref = simple_cnn_reference(params, x)
    assert bool(jnp.allclose(out, ref, atol=1e-2))
    print("KERNEL_OK")
</pallas_src>

<mosaic_0001>
module attributes {stable_mosaic.version = 11 : i64} {
  func.func @kernel(%arg0: i32, %arg1: memref<16x128xbf16, #tpu.memory_space<vmem>>, %arg2: memref<128x256xbf16, #tpu.memory_space<vmem>>, %arg3: memref<256x128xbf16, #tpu.memory_space<vmem>>, %arg4: memref<5x128x128xbf16, #tpu.memory_space<vmem>>, %arg5: memref<16x128xf32, #tpu.memory_space<vmem>>) attributes {dimension_semantics = [#tpu.dimension_semantics<parallel>], iteration_bounds = array<i64: 1>, scalar_prefetch = 0 : i64, scratch_operands = 0 : i64, tpu.core_type = #tpu.core_type<tc>, window_params = [{transform_indices = @transform_0, window_bounds = array<i64: 16, 128>}, {pipeline_mode = #tpu.pipeline_mode<synchronous>, transform_indices = @transform_1, window_bounds = array<i64: 128, 256>}, {pipeline_mode = #tpu.pipeline_mode<synchronous>, transform_indices = @transform_2, window_bounds = array<i64: 256, 128>}, {pipeline_mode = #tpu.pipeline_mode<synchronous>, transform_indices = @transform_3, window_bounds = array<i64: 5, 128, 128>}, {transform_indices = @transform_4, window_bounds = array<i64: 16, 128>}]} {
    %c0 = arith.constant 0 : index
    %c0_0 = arith.constant 0 : index
    %0 = vector.load %arg1[%c0, %c0_0] : memref<16x128xbf16, #tpu.memory_space<vmem>>, vector<16x128xbf16>
    %c0_1 = arith.constant 0 : index
    %c0_2 = arith.constant 0 : index
    %1 = vector.load %arg2[%c0_1, %c0_2] : memref<128x256xbf16, #tpu.memory_space<vmem>>, vector<128x256xbf16>
    %cst = arith.constant dense<0.000000e+00> : vector<16x256xf32>
    %2 = tpu.matmul %0, %1, %cst {dimension_numbers = #tpu.dot_dimension_numbers<[1], [0], [0], [1], [0, 0, 1, 1], [], []>} : vector<16x128xbf16>, vector<128x256xbf16>, vector<16x256xf32> -> vector<16x256xf32>
    %3 = arith.truncf %2 : vector<16x256xf32> to vector<16x256xbf16>
    %cst_3 = arith.constant 0.000000e+00 : bf16
    %4 = vector.broadcast %cst_3 : bf16 to vector<16x256xbf16>
    %5 = arith.maximumf %3, %4 : vector<16x256xbf16>
    %c0_4 = arith.constant 0 : index
    %c0_5 = arith.constant 0 : index
    %6 = vector.load %arg3[%c0_4, %c0_5] : memref<256x128xbf16, #tpu.memory_space<vmem>>, vector<256x128xbf16>
    %cst_6 = arith.constant dense<0.000000e+00> : vector<16x128xf32>
    %7 = tpu.matmul %5, %6, %cst_6 {dimension_numbers = #tpu.dot_dimension_numbers<[1], [0], [0], [1], [0, 0, 1, 1], [], []>} : vector<16x256xbf16>, vector<256x128xbf16>, vector<16x128xf32> -> vector<16x128xf32>
    %8 = arith.truncf %7 : vector<16x128xf32> to vector<16x128xbf16>
    %cst_7 = arith.constant 0.000000e+00 : bf16
    %9 = vector.broadcast %cst_7 : bf16 to vector<16x128xbf16>
    %10 = arith.maximumf %8, %9 : vector<16x128xbf16>
    %c0_8 = arith.constant 0 : index
    %c0_9 = arith.constant 0 : index
    %c0_10 = arith.constant 0 : index
    %11 = vector.load %arg4[%c0_8, %c0_9, %c0_10] : memref<5x128x128xbf16, #tpu.memory_space<vmem>>, vector<1x128x128xbf16>
    %12 = vector.shape_cast %11 : vector<1x128x128xbf16> to vector<128x128xbf16>
    %cst_11 = arith.constant dense<0.000000e+00> : vector<16x128xf32>
    %13 = tpu.matmul %10, %12, %cst_11 {dimension_numbers = #tpu.dot_dimension_numbers<[1], [0], [0], [1], [0, 0, 1, 1], [], []>} : vector<16x128xbf16>, vector<128x128xbf16>, vector<16x128xf32> -> vector<16x128xf32>
    %14 = arith.truncf %13 : vector<16x128xf32> to vector<16x128xbf16>
    %cst_12 = arith.constant 0.000000e+00 : bf16
    %15 = vector.broadcast %cst_12 : bf16 to vector<16x128xbf16>
    %16 = arith.maximumf %14, %15 : vector<16x128xbf16>
    %c1 = arith.constant 1 : index
    %c0_13 = arith.constant 0 : index
    %c0_14 = arith.constant 0 : index
    %17 = vector.load %arg4[%c1, %c0_13, %c0_14] : memref<5x128x128xbf16, #tpu.memory_space<vmem>>, vector<1x128x128xbf16>
    %18 = vector.shape_cast %17 : vector<1x128x128xbf16> to vector<128x128xbf16>
    %cst_15 = arith.constant dense<0.000000e+00> : vector<16x128xf32>
    %19 = tpu.matmul %16, %18, %cst_15 {dimension_numbers = #tpu.dot_dimension_numbers<[1], [0], [0], [1], [0, 0, 1, 1], [], []>} : vector<16x128xbf16>, vector<128x128xbf16>, vector<16x128xf32> -> vector<16x128xf32>
    %20 = arith.truncf %19 : vector<16x128xf32> to vector<16x128xbf16>
    %cst_16 = arith.constant 0.000000e+00 : bf16
    %21 = vector.broadcast %cst_16 : bf16 to vector<16x128xbf16>
    %22 = arith.maximumf %20, %21 : vector<16x128xbf16>
    %c2 = arith.constant 2 : index
    %c0_17 = arith.constant 0 : index
    %c0_18 = arith.constant 0 : index
    %23 = vector.load %arg4[%c2, %c0_17, %c0_18] : memref<5x128x128xbf16, #tpu.memory_space<vmem>>, vector<1x128x128xbf16>
    %24 = vector.shape_cast %23 : vector<1x128x128xbf16> to vector<128x128xbf16>
    %cst_19 = arith.constant dense<0.000000e+00> : vector<16x128xf32>
    %25 = tpu.matmul %22, %24, %cst_19 {dimension_numbers = #tpu.dot_dimension_numbers<[1], [0], [0], [1], [0, 0, 1, 1], [], []>} : vector<16x128xbf16>, vector<128x128xbf16>, vector<16x128xf32> -> vector<16x128xf32>
    %26 = arith.truncf %25 : vector<16x128xf32> to vector<16x128xbf16>
    %cst_20 = arith.constant 0.000000e+00 : bf16
    %27 = vector.broadcast %cst_20 : bf16 to vector<16x128xbf16>
    %28 = arith.maximumf %26, %27 : vector<16x128xbf16>
    %c3 = arith.constant 3 : index
    %c0_21 = arith.constant 0 : index
    %c0_22 = arith.constant 0 : index
    %29 = vector.load %arg4[%c3, %c0_21, %c0_22] : memref<5x128x128xbf16, #tpu.memory_space<vmem>>, vector<1x128x128xbf16>
    %30 = vector.shape_cast %29 : vector<1x128x128xbf16> to vector<128x128xbf16>
    %cst_23 = arith.constant dense<0.000000e+00> : vector<16x128xf32>
    %31 = tpu.matmul %28, %30, %cst_23 {dimension_numbers = #tpu.dot_dimension_numbers<[1], [0], [0], [1], [0, 0, 1, 1], [], []>} : vector<16x128xbf16>, vector<128x128xbf16>, vector<16x128xf32> -> vector<16x128xf32>
    %32 = arith.truncf %31 : vector<16x128xf32> to vector<16x128xbf16>
    %cst_24 = arith.constant 0.000000e+00 : bf16
    %33 = vector.broadcast %cst_24 : bf16 to vector<16x128xbf16>
    %34 = arith.maximumf %32, %33 : vector<16x128xbf16>
    %c4 = arith.constant 4 : index
    %c0_25 = arith.constant 0 : index
    %c0_26 = arith.constant 0 : index
    %35 = vector.load %arg4[%c4, %c0_25, %c0_26] : memref<5x128x128xbf16, #tpu.memory_space<vmem>>, vector<1x128x128xbf16>
    %36 = vector.shape_cast %35 : vector<1x128x128xbf16> to vector<128x128xbf16>
    %cst_27 = arith.constant dense<0.000000e+00> : vector<16x128xf32>
    %37 = tpu.matmul %34, %36, %cst_27 {dimension_numbers = #tpu.dot_dimension_numbers<[1], [0], [0], [1], [0, 0, 1, 1], [], []>} : vector<16x128xbf16>, vector<128x128xbf16>, vector<16x128xf32> -> vector<16x128xf32>
    %cst_28 = arith.constant dense<0xFF800000> : vector<16xf32>
    %38 = vector.multi_reduction <maximumf>, %37, %cst_28 [1] : vector<16x128xf32> to vector<16xf32>
    %39 = vector.shape_cast %38 : vector<16xf32> to vector<16x1xf32>
    %40 = vector.broadcast %39 : vector<16x1xf32> to vector<16x128xf32>
    %41 = arith.subf %37, %40 : vector<16x128xf32>
    %42 = math.exp %41 : vector<16x128xf32>
    %cst_29 = arith.constant dense<0.000000e+00> : vector<16xf32>
    %43 = vector.multi_reduction <add>, %42, %cst_29 [1] : vector<16x128xf32> to vector<16xf32>
    %44 = vector.shape_cast %43 : vector<16xf32> to vector<16x1xf32>
    %45 = tpu.reciprocal %44 : vector<16x1xf32> -> vector<16x1xf32>
    %46 = vector.broadcast %45 : vector<16x1xf32> to vector<16x128xf32>
    %47 = arith.mulf %42, %46 : vector<16x128xf32>
    %c0_30 = arith.constant 0 : index
    %c0_31 = arith.constant 0 : index
    %48 = vector.load %arg5[%c0_30, %c0_31] : memref<16x128xf32, #tpu.memory_space<vmem>>, vector<16x128xf32>
    tpu.vector_store %arg5[%c0_30, %c0_31], %47 {strides = array<i32>} : memref<16x128xf32, #tpu.memory_space<vmem>>, vector<16x128xf32>,
    return
  }
  func.func @transform_0(%arg0: i32) -> (i32, i32) {
    %c0_i32 = arith.constant 0 : i32
    %c0_i32_0 = arith.constant 0 : i32
    return %arg0, %c0_i32 : i32, i32
  }
  func.func @transform_1(%arg0: i32) -> (i32, i32) {
    %c0_i32 = arith.constant 0 : i32
    %c0_i32_0 = arith.constant 0 : i32
    %c0_i32_1 = arith.constant 0 : i32
    return %c0_i32, %c0_i32_0 : i32, i32
  }
  func.func @transform_2(%arg0: i32) -> (i32, i32) {
    %c0_i32 = arith.constant 0 : i32
    %c0_i32_0 = arith.constant 0 : i32
    %c0_i32_1 = arith.constant 0 : i32
    return %c0_i32, %c0_i32_0 : i32, i32
  }
  func.func @transform_3(%arg0: i32) -> (i32, i32, i32) {
    %c0_i32 = arith.constant 0 : i32
    %c0_i32_0 = arith.constant 0 : i32
    %c0_i32_1 = arith.constant 0 : i32
    %c0_i32_2 = arith.constant 0 : i32
    return %c0_i32, %c0_i32_0, %c0_i32_1 : i32, i32, i32
  }
  func.func @transform_4(%arg0: i32) -> (i32, i32) {
    %c0_i32 = arith.constant 0 : i32
    %c0_i32_0 = arith.constant 0 : i32
    return %arg0, %c0_i32 : i32, i32
  }
}

</mosaic_0001>

<llo_original>
// kernel: simple_cnn_forward.1
$region0: #{simple_cnn_forward.1}
  #allocation0 [shape = 'u32[]', space=smem, size = 0x4, offset = 0x4, fixed_abs, tag = 'smem constant byte address 0x4 - core index']
  #allocation1 [shape = 'u32[72,128]{1,0:T(1,128)}', space=vmem, size = 0x9000, scoped, tag = 'internal scratch']
  %s0 = inlined_call_operand.vmem [shape: bf16[16,128], index: 0, kind: input, shape index: {}]
  %s1 = inlined_call_operand.hbm [shape: bf16[128,256], index: 1, kind: input, shape index: {}]
  %s2 = inlined_call_operand.hbm [shape: bf16[256,128], index: 2, kind: input, shape index: {}]
  %s3 = inlined_call_operand.hbm [shape: bf16[5,128,128], index: 3, kind: input, shape index: {}]
  %s4 = inlined_call_operand.vmem [shape: f32[16,128], index: 4, kind: output, shape index: {}]
  %s5 = sld [smem:[#allocation0]]
  $region38: #{simple_cnn_forward.1} parent=0
    _
  %s7 = ssub.s32 1, %s5
  %s8 = scalar_select 0, %s7, %s5
  $region1: #{simple_cnn_forward.1} parent=0
    #allocation2 [shape = 'u8[65536]{0}', space=vmem, size = 0x10000, scoped, tag = 'input window, operand 1, single buffered']
    #allocation3 [shape = 's32[1]{0}', space=sflag, size = 0x4, scoped, tag = 'scoped memory for simple_cnn_forward.1']
    #allocation4 [shape = 'u8[65536]{0}', space=vmem, size = 0x10000, scoped, tag = 'input window, operand 2, single buffered']
    #allocation5 [shape = 's32[1]{0}', space=sflag, size = 0x4, scoped, tag = 'scoped memory for simple_cnn_forward.1']
    #allocation6 [shape = 'u8[163840]{0}', space=vmem, size = 0x28000, scoped, tag = 'input window, operand 3, single buffered']
    %9 = vsyncpa [#allocation3], 0
    %10 = vsyncpa [#allocation5], 0
    // Predicated region
    $region2: #{simple_cnn_forward.1} parent=1 // pred_check
      _
    $region3: #{simple_cnn_forward.1} parent=1 // pred_check_branch
      %12 = sbr.rel (0) target = $region5
    $region4: #{simple_cnn_forward.1} parent=1 // pred_region
      _
    $region5: #{simple_cnn_forward.1} parent=1 // pred_fallthru
      _
    // Predicated region
    $region6: #{simple_cnn_forward.1} parent=1 // pred_check
      _
    $region7: #{simple_cnn_forward.1} parent=1 // pred_check_branch
      %14 = sbr.rel (0) target = $region9
    $region8: #{simple_cnn_forward.1} parent=1 // pred_region
      %16 = vsyncadd [#allocation3], 0
      %s17 = sshll.u32 %s1, 4
      %s18 = int_to_ptr.hbm [resolvable:$true] %s17
      %s19 = sshll.u32 [#allocation2], 4
      %s20 = int_to_ptr.vmem [resolvable:$true] %s19
      %25 = dma.hbm_to_vmem [thread:$0]  %s18, 2048, %s20, [#allocation3], 128, 128, 8
    $region9: #{simple_cnn_forward.1} parent=1 // pred_fallthru
      _
    // Predicated region
    $region10: #{simple_cnn_forward.1} parent=1 // pred_check
      _
    $region11: #{simple_cnn_forward.1} parent=1 // pred_check_branch
      %27 = sbr.rel (0) target = $region13
    $region12: #{simple_cnn_forward.1} parent=1 // pred_region
      %29 = vsyncadd [#allocation5], 0
      %s30 = sshll.u32 %s2, 4
      %s31 = int_to_ptr.hbm [resolvable:$true] %s30
      %s32 = sshll.u32 [#allocation4], 4
      %s33 = int_to_ptr.vmem [resolvable:$true] %s32
      %38 = dma.hbm_to_vmem [thread:$0]  %s31, 2048, %s33, [#allocation5], 64, 64, 4
    $region13: #{simple_cnn_forward.1} parent=1 // pred_fallthru
      _
    // Predicated region
    $region14: #{simple_cnn_forward.1} parent=1 // pred_check
      _
    $region15: #{simple_cnn_forward.1} parent=1 // pred_check_branch
      %40 = sbr.rel (0) target = $region17
    $region16: #{simple_cnn_forward.1} parent=1 // pred_region
      %42 = vsyncadd [#allocation5], 0
      %s43 = sshll.u32 %s3, 4
      %s44 = int_to_ptr.hbm [resolvable:$true] %s43
      %s45 = sshll.u32 [#allocation6], 4
      %s46 = int_to_ptr.vmem [resolvable:$true] %s45
      %51 = dma.hbm_to_vmem [thread:$0]  %s44, 5120, %s46, [#allocation5], 64, 64, 4
    $region17: #{simple_cnn_forward.1} parent=1 // pred_fallthru
      _
    // Predicated region
    $region18: #{simple_cnn_forward.1} parent=1 // pred_check
      _
    $region19: #{simple_cnn_forward.1} parent=1 // pred_check_branch
      %53 = sbr.rel (0) target = $region21
    $region20: #{simple_cnn_forward.1} parent=1 // pred_region
      %55 = dma.done [#allocation3], 2048
    $region21: #{simple_cnn_forward.1} parent=1 // pred_fallthru
      _
    // Predicated region
    $region22: #{simple_cnn_forward.1} parent=1 // pred_check
      _
    $region23: #{simple_cnn_forward.1} parent=1 // pred_check_branch
      %57 = sbr.rel (0) target = $region25
    $region24: #{simple_cnn_forward.1} parent=1 // pred_region
      %59 = dma.done [#allocation5], 2048
    $region25: #{simple_cnn_forward.1} parent=1 // pred_fallthru
      _
    // Predicated region
    $region26: #{simple_cnn_forward.1} parent=1 // pred_check
      _
    $region27: #{simple_cnn_forward.1} parent=1 // pred_check_branch
      %61 = sbr.rel (0) target = $region29
    $region28: #{simple_cnn_forward.1} parent=1 // pred_region
      %63 = dma.done [#allocation5], 5120
    $region29: #{simple_cnn_forward.1} parent=1 // pred_fallthru
      _
    %v64 = vld [vmem:[%s0] sm:$0xf]
    %v65 = vld [vmem:[%s0 + $0x4] sm:$0xf]
    %v66 = vld [vmem:[#allocation2] sm:$0xff]
    %v67 = vld [vmem:[#allocation2 + $0x8] sm:$0xff]
    %v68 = vld [vmem:[#allocation2 + $0x10] sm:$0xff]
    %v69 = vld [vmem:[#allocation2 + $0x18] sm:$0xff]
    %v70 = vld [vmem:[#allocation2 + $0x20] sm:$0xff]
    %v71 = vld [vmem:[#allocation2 + $0x28] sm:$0xff]
    %v72 = vld [vmem:[#allocation2 + $0x30] sm:$0xff]
    %v73 = vld [vmem:[#allocation2 + $0x38] sm:$0xff]
    %v74 = vld [vmem:[#allocation2 + $0x40] sm:$0xff]
    %v75 = vld [vmem:[#allocation2 + $0x48] sm:$0xff]
    %v76 = vld [vmem:[#allocation2 + $0x50] sm:$0xff]
    %v77 = vld [vmem:[#allocation2 + $0x58] sm:$0xff]
    %v78 = vld [vmem:[#allocation2 + $0x60] sm:$0xff]
    %v79 = vld [vmem:[#allocation2 + $0x68] sm:$0xff]
    %v80 = vld [vmem:[#allocation2 + $0x70] sm:$0xff]
    %v81 = vld [vmem:[#allocation2 + $0x78] sm:$0xff]
    %v84 = vunpack.c.l.b16 %v64
    %v85 = vunpack.c.l.b16 %v65
    %v86 = vpack.c.b16 %v85, %v84
    %v104 = vunpack.c.l.b16 %v66
    %v105 = vunpack.c.h.b16 %v66
    %v106 = vunpack.c.l.b16 %v67
    %v107 = vunpack.c.h.b16 %v67
    %v108 = vunpack.c.l.b16 %v68
    %v109 = vunpack.c.h.b16 %v68
    %v110 = vunpack.c.l.b16 %v69
    %v111 = vunpack.c.h.b16 %v69
    %v112 = vunpack.c.l.b16 %v70
    %v113 = vunpack.c.h.b16 %v70
    %v114 = vunpack.c.l.b16 %v71
    %v115 = vunpack.c.h.b16 %v71
    %v116 = vunpack.c.l.b16 %v72
    %v117 = vunpack.c.h.b16 %v72
    %v118 = vunpack.c.l.b16 %v73
    %v119 = vunpack.c.h.b16 %v73
    %v120 = vunpack.c.l.b16 %v74
    %v121 = vunpack.c.h.b16 %v74
    %v122 = vunpack.c.l.b16 %v75
    %v123 = vunpack.c.h.b16 %v75
    %v124 = vunpack.c.l.b16 %v76
    %v125 = vunpack.c.h.b16 %v76
    %v126 = vunpack.c.l.b16 %v77
    %v127 = vunpack.c.h.b16 %v77
    %v128 = vunpack.c.l.b16 %v78
    %v129 = vunpack.c.h.b16 %v78
    %v130 = vunpack.c.l.b16 %v79
    %v131 = vunpack.c.h.b16 %v79
    %v132 = vunpack.c.l.b16 %v80
    %v133 = vunpack.c.h.b16 %v80
    %v134 = vunpack.c.l.b16 %v81
    %v135 = vunpack.c.h.b16 %v81
    %v136 = vpack.c.b16 %v106, %v104
    %v137 = vpack.c.b16 %v107, %v105
    %v138 = vpack.c.b16 %v110, %v108
    %v139 = vpack.c.b16 %v111, %v109
    %v140 = vpack.c.b16 %v114, %v112
    %v141 = vpack.c.b16 %v115, %v113
    %v142 = vpack.c.b16 %v118, %v116
    %v143 = vpack.c.b16 %v119, %v117
    %v144 = vpack.c.b16 %v122, %v120
    %v145 = vpack.c.b16 %v123, %v121
    %v146 = vpack.c.b16 %v126, %v124
    %v147 = vpack.c.b16 %v127, %v125
    %v148 = vpack.c.b16 %v130, %v128
    %v149 = vpack.c.b16 %v131, %v129
    %v150 = vpack.c.b16 %v134, %v132
    %v151 = vpack.c.b16 %v135, %v133
    %168 = vmatpush.bf16.msra.mxu0 %v150
    %169 = vmatpush.bf16.msra.mxu0 %v148
    %170 = vmatpush.bf16.msra.mxu0 %v146
    %171 = vmatpush.bf16.msra.mxu0 %v144
    %172 = vmatpush.bf16.msra.mxu0 %v142
    %173 = vmatpush.bf16.msra.mxu0 %v140
    %174 = vmatpush.bf16.msra.mxu0 %v138
    %175 = vmatpush.bf16.msra.mxu0 %v136
    %176 = vmatmul.bf16.gmra.mxu0 %v86
    %v177 = vpop.f32.mrf.mxu0
    %v178 = vadd.f32 0.0, %v177
    %v179 = vpop.f32.mrf.mxu0
    %v180 = vadd.f32 0.0, %v179
    %181 = vdwg.mxu0
    %182 = vmatpush.bf16.msra.mxu0 %v151
    %183 = vmatpush.bf16.msra.mxu0 %v149
    %184 = vmatpush.bf16.msra.mxu0 %v147
    %185 = vmatpush.bf16.msra.mxu0 %v145
    %186 = vmatpush.bf16.msra.mxu0 %v143
    %187 = vmatpush.bf16.msra.mxu0 %v141
    %188 = vmatpush.bf16.msra.mxu0 %v139
    %189 = vmatpush.bf16.msra.mxu0 %v137
    %190 = vmatmul.bf16.gmra.mxu0 %v86
    %v191 = vpop.f32.mrf.mxu0
    %v192 = vadd.f32 0.0, %v191
    %v193 = vpop.f32.mrf.mxu0
    %v194 = vadd.f32 0.0, %v193
    %195 = vdwg.mxu0
    %v196 = vpack.c.bf16 %v192, %v178
    %v197 = vpack.c.bf16 %v194, %v180
    %v198 = vunpack.c.l.bf16 %v196
    %v199 = vunpack.c.h.bf16 %v196
    %v200 = vunpack.c.l.bf16 %v197
    %v201 = vunpack.c.h.bf16 %v197
    %v202 = vmax.f32 %v198, 0.0
    %v203 = vmax.f32 %v199, 0.0
    %v204 = vmax.f32 %v200, 0.0
    %v205 = vmax.f32 %v201, 0.0
    %v206 = vpack.c.bf16 %v204, %v202
    %v207 = vpack.c.bf16 %v205, %v203
    %v208 = vld [vmem:[#allocation4] sm:$0xf]
    %v209 = vld [vmem:[#allocation4 + $0x4] sm:$0xf]
    %v210 = vld [vmem:[#allocation4 + $0x8] sm:$0xf]
    %v211 = vld [vmem:[#allocation4 + $0xc] sm:$0xf]
    %v212 = vld [vmem:[#allocation4 + $0x10] sm:$0xf]
    %v213 = vld [vmem:[#allocation4 + $0x14] sm:$0xf]
    %v214 = vld [vmem:[#allocation4 + $0x18] sm:$0xf]
    %v215 = vld [vmem:[#allocation4 + $0x1c] sm:$0xf]
    %v216 = vld [vmem:[#allocation4 + $0x20] sm:$0xf]
    %v217 = vld [vmem:[#allocation4 + $0x24] sm:$0xf]
    %v218 = vld [vmem:[#allocation4 + $0x28] sm:$0xf]
    %v219 = vld [vmem:[#allocation4 + $0x2c] sm:$0xf]
    %v220 = vld [vmem:[#allocation4 + $0x30] sm:$0xf]
    %v221 = vld [vmem:[#allocation4 + $0x34] sm:$0xf]
    %v222 = vld [vmem:[#allocation4 + $0x38] sm:$0xf]
    %v223 = vld [vmem:[#allocation4 + $0x3c] sm:$0xf]
    %v224 = vld [vmem:[#allocation4 + $0x40] sm:$0xf]
    %v225 = vld [vmem:[#allocation4 + $0x44] sm:$0xf]
    %v226 = vld [vmem:[#allocation4 + $0x48] sm:$0xf]
    %v227 = vld [vmem:[#allocation4 + $0x4c] sm:$0xf]
    %v228 = vld [vmem:[#allocation4 + $0x50] sm:$0xf]
    %v229 = vld [vmem:[#allocation4 + $0x54] sm:$0xf]
    %v230 = vld [vmem:[#allocation4 + $0x58] sm:$0xf]
    %v231 = vld [vmem:[#allocation4 + $0x5c] sm:$0xf]
    %v232 = vld [vmem:[#allocation4 + $0x60] sm:$0xf]
    %v233 = vld [vmem:[#allocation4 + $0x64] sm:$0xf]
    %v234 = vld [vmem:[#allocation4 + $0x68] sm:$0xf]
    %v235 = vld [vmem:[#allocation4 + $0x6c] sm:$0xf]
    %v236 = vld [vmem:[#allocation4 + $0x70] sm:$0xf]
    %v237 = vld [vmem:[#allocation4 + $0x74] sm:$0xf]
    %v238 = vld [vmem:[#allocation4 + $0x78] sm:$0xf]
    %v239 = vld [vmem:[#allocation4 + $0x7c] sm:$0xf]
    %v272 = vunpack.c.l.b16 %v208
    %v273 = vunpack.c.l.b16 %v209
    %v274 = vunpack.c.l.b16 %v210
    %v275 = vunpack.c.l.b16 %v211
    %v276 = vunpack.c.l.b16 %v212
    %v277 = vunpack.c.l.b16 %v213
    %v278 = vunpack.c.l.b16 %v214
    %v279 = vunpack.c.l.b16 %v215
    %v280 = vunpack.c.l.b16 %v216
    %v281 = vunpack.c.l.b16 %v217
    %v282 = vunpack.c.l.b16 %v218
    %v283 = vunpack.c.l.b16 %v219
    %v284 = vunpack.c.l.b16 %v220
    %v285 = vunpack.c.l.b16 %v221
    %v286 = vunpack.c.l.b16 %v222
    %v287 = vunpack.c.l.b16 %v223
    %v288 = vunpack.c.l.b16 %v224
    %v289 = vunpack.c.l.b16 %v225
    %v290 = vunpack.c.l.b16 %v226
    %v291 = vunpack.c.l.b16 %v227
    %v292 = vunpack.c.l.b16 %v228
    %v293 = vunpack.c.l.b16 %v229
    %v294 = vunpack.c.l.b16 %v230
    %v295 = vunpack.c.l.b16 %v231
    %v296 = vunpack.c.l.b16 %v232
    %v297 = vunpack.c.l.b16 %v233
    %v298 = vunpack.c.l.b16 %v234
    %v299 = vunpack.c.l.b16 %v235
    %v300 = vunpack.c.l.b16 %v236
    %v301 = vunpack.c.l.b16 %v237
    %v302 = vunpack.c.l.b16 %v238
    %v303 = vunpack.c.l.b16 %v239
    %v304 = vpack.c.b16 %v273, %v272
    %v305 = vpack.c.b16 %v275, %v274
    %v306 = vpack.c.b16 %v277, %v276
    %v307 = vpack.c.b16 %v279, %v278
    %v308 = vpack.c.b16 %v281, %v280
    %v309 = vpack.c.b16 %v283, %v282
    %v310 = vpack.c.b16 %v285, %v284
    %v311 = vpack.c.b16 %v287, %v286
    %v312 = vpack.c.b16 %v289, %v288
    %v313 = vpack.c.b16 %v291, %v290
    %v314 = vpack.c.b16 %v293, %v292
    %v315 = vpack.c.b16 %v295, %v294
    %v316 = vpack.c.b16 %v297, %v296
    %v317 = vpack.c.b16 %v299, %v298
    %v318 = vpack.c.b16 %v301, %v300
    %v319 = vpack.c.b16 %v303, %v302
    %336 = vmatpush.bf16.msra.mxu0 %v311
    %337 = vmatpush.bf16.msra.mxu0 %v310
    %338 = vmatpush.bf16.msra.mxu0 %v309
    %339 = vmatpush.bf16.msra.mxu0 %v308
    %340 = vmatpush.bf16.msra.mxu0 %v307
    %341 = vmatpush.bf16.msra.mxu0 %v306
    %342 = vmatpush.bf16.msra.mxu0 %v305
    %343 = vmatpush.bf16.msra.mxu0 %v304
    %344 = vmatmul.bf16.gmra.mxu0 %v206
    %v345 = vpop.f32.mrf.mxu0
    %v346 = vadd.f32 0.0, %v345
    %v347 = vpop.f32.mrf.mxu0
    %v348 = vadd.f32 0.0, %v347
    %349 = vdwg.mxu0
    %350 = vmatpush.bf16.msra.mxu0 %v319
    %351 = vmatpush.bf16.msra.mxu0 %v318
    %352 = vmatpush.bf16.msra.mxu0 %v317
    %353 = vmatpush.bf16.msra.mxu0 %v316
    %354 = vmatpush.bf16.msra.mxu0 %v315
    %355 = vmatpush.bf16.msra.mxu0 %v314
    %356 = vmatpush.bf16.msra.mxu0 %v313
    %357 = vmatpush.bf16.msra.mxu0 %v312
    %358 = vmatmul.bf16.gmra.mxu0 %v207
    %v359 = vpop.f32.mrf.mxu0
    %v360 = vadd.f32 %v346, %v359
    %v361 = vpop.f32.mrf.mxu0
    %v362 = vadd.f32 %v348, %v361
    %363 = vdwg.mxu0
    %v364 = vpack.c.bf16 %v360, %v360
    %v365 = vpack.c.bf16 %v362, %v362
    %v366 = vunpack.c.l.bf16 %v364
    %v367 = vunpack.c.l.bf16 %v365
    %v368 = vmax.f32 %v366, 0.0
    %v369 = vmax.f32 %v367, 0.0
    %v370 = vpack.c.bf16 %v369, %v368
    %v371 = vld [vmem:[#allocation6] sm:$0xf]
    %v372 = vld [vmem:[#allocation6 + $0x4] sm:$0xf]
    %v373 = vld [vmem:[#allocation6 + $0x8] sm:$0xf]
    %v374 = vld [vmem:[#allocation6 + $0xc] sm:$0xf]
    %v375 = vld [vmem:[#allocation6 + $0x10] sm:$0xf]
    %v376 = vld [vmem:[#allocation6 + $0x14] sm:$0xf]
    %v377 = vld [vmem:[#allocation6 + $0x18] sm:$0xf]
    %v378 = vld [vmem:[#allocation6 + $0x1c] sm:$0xf]
    %v379 = vld [vmem:[#allocation6 + $0x20] sm:$0xf]
    %v380 = vld [vmem:[#allocation6 + $0x24] sm:$0xf]
    %v381 = vld [vmem:[#allocation6 + $0x28] sm:$0xf]
    %v382 = vld [vmem:[#allocation6 + $0x2c] sm:$0xf]
    %v383 = vld [vmem:[#allocation6 + $0x30] sm:$0xf]
    %v384 = vld [vmem:[#allocation6 + $0x34] sm:$0xf]
    %v385 = vld [vmem:[#allocation6 + $0x38] sm:$0xf]
    %v386 = vld [vmem:[#allocation6 + $0x3c] sm:$0xf]
    %v403 = vunpack.c.l.b16 %v371
    %v404 = vunpack.c.l.b16 %v372
    %v405 = vunpack.c.l.b16 %v373
    %v406 = vunpack.c.l.b16 %v374
    %v407 = vunpack.c.l.b16 %v375
    %v408 = vunpack.c.l.b16 %v376
    %v409 = vunpack.c.l.b16 %v377
    %v410 = vunpack.c.l.b16 %v378
    %v411 = vunpack.c.l.b16 %v379
    %v412 = vunpack.c.l.b16 %v380
    %v413 = vunpack.c.l.b16 %v381
    %v414 = vunpack.c.l.b16 %v382
    %v415 = vunpack.c.l.b16 %v383
    %v416 = vunpack.c.l.b16 %v384
    %v417 = vunpack.c.l.b16 %v385
    %v418 = vunpack.c.l.b16 %v386
    %v419 = vpack.c.b16 %v404, %v403
    %v420 = vpack.c.b16 %v406, %v405
    %v421 = vpack.c.b16 %v408, %v407
    %v422 = vpack.c.b16 %v410, %v409
    %v423 = vpack.c.b16 %v412, %v411
    %v424 = vpack.c.b16 %v414, %v413
    %v425 = vpack.c.b16 %v416, %v415
    %v426 = vpack.c.b16 %v418, %v417
    %435 = vmatpush.bf16.msra.mxu0 %v426
    %436 = vmatpush.bf16.msra.mxu0 %v425
    %437 = vmatpush.bf16.msra.mxu0 %v424
    %438 = vmatpush.bf16.msra.mxu0 %v423
    %439 = vmatpush.bf16.msra.mxu0 %v422
    %440 = vmatpush.bf16.msra.mxu0 %v421
    %441 = vmatpush.bf16.msra.mxu0 %v420
    %442 = vmatpush.bf16.msra.mxu0 %v419
    %443 = vmatmul.bf16.gmra.mxu0 %v370
    %v444 = vpop.f32.mrf.mxu0
    %v445 = vadd.f32 0.0, %v444
    %v446 = vpop.f32.mrf.mxu0
    %v447 = vadd.f32 0.0, %v446
    %448 = vdwg.mxu0
    %v449 = vpack.c.bf16 %v445, %v445
    %v450 = vpack.c.bf16 %v447, %v447
    %v451 = vunpack.c.l.bf16 %v449
    %v452 = vunpack.c.l.bf16 %v450
    %v453 = vmax.f32 %v451, 0.0
    %v454 = vmax.f32 %v452, 0.0
    %v455 = vpack.c.bf16 %v454, %v453
    %s456 = scalar_lea.vmem [#allocation6], 64
    %v457 = vld [vmem:[%s456] sm:$0xf]
    %v458 = vld [vmem:[%s456 + $0x4] sm:$0xf]
    %v459 = vld [vmem:[%s456 + $0x8] sm:$0xf]
    %v460 = vld [vmem:[%s456 + $0xc] sm:$0xf]
    %v461 = vld [vmem:[%s456 + $0x10] sm:$0xf]
    %v462 = vld [vmem:[%s456 + $0x14] sm:$0xf]
    %v463 = vld [vmem:[%s456 + $0x18] sm:$0xf]
    %v464 = vld [vmem:[%s456 + $0x1c] sm:$0xf]
    %v465 = vld [vmem:[%s456 + $0x20] sm:$0xf]
    %v466 = vld [vmem:[%s456 + $0x24] sm:$0xf]
    %v467 = vld [vmem:[%s456 + $0x28] sm:$0xf]
    %v468 = vld [vmem:[%s456 + $0x2c] sm:$0xf]
    %v469 = vld [vmem:[%s456 + $0x30] sm:$0xf]
    %v470 = vld [vmem:[%s456 + $0x34] sm:$0xf]
    %v471 = vld [vmem:[%s456 + $0x38] sm:$0xf]
    %v472 = vld [vmem:[%s456 + $0x3c] sm:$0xf]
    %v489 = vunpack.c.l.b16 %v457
    %v490 = vunpack.c.l.b16 %v458
    %v491 = vunpack.c.l.b16 %v459
    %v492 = vunpack.c.l.b16 %v460
    %v493 = vunpack.c.l.b16 %v461
    %v494 = vunpack.c.l.b16 %v462
    %v495 = vunpack.c.l.b16 %v463
    %v496 = vunpack.c.l.b16 %v464
    %v497 = vunpack.c.l.b16 %v465
    %v498 = vunpack.c.l.b16 %v466
    %v499 = vunpack.c.l.b16 %v467
    %v500 = vunpack.c.l.b16 %v468
    %v501 = vunpack.c.l.b16 %v469
    %v502 = vunpack.c.l.b16 %v470
    %v503 = vunpack.c.l.b16 %v471
    %v504 = vunpack.c.l.b16 %v472
    %v505 = vpack.c.b16 %v490, %v489
    %v506 = vpack.c.b16 %v492, %v491
    %v507 = vpack.c.b16 %v494, %v493
    %v508 = vpack.c.b16 %v496, %v495
    %v509 = vpack.c.b16 %v498, %v497
    %v510 = vpack.c.b16 %v500, %v499
    %v511 = vpack.c.b16 %v502, %v501
    %v512 = vpack.c.b16 %v504, %v503
    %521 = vmatpush.bf16.msra.mxu0 %v512
    %522 = vmatpush.bf16.msra.mxu0 %v511
    %523 = vmatpush.bf16.msra.mxu0 %v510
    %524 = vmatpush.bf16.msra.mxu0 %v509
    %525 = vmatpush.bf16.msra.mxu0 %v508
    %526 = vmatpush.bf16.msra.mxu0 %v507
    %527 = vmatpush.bf16.msra.mxu0 %v506
    %528 = vmatpush.bf16.msra.mxu0 %v505
    %529 = vmatmul.bf16.gmra.mxu0 %v455
    %v530 = vpop.f32.mrf.mxu0
    %v531 = vadd.f32 0.0, %v530
    %v532 = vpop.f32.mrf.mxu0
    %v533 = vadd.f32 0.0, %v532
    %534 = vdwg.mxu0
    %v535 = vpack.c.bf16 %v531, %v531
    %v536 = vpack.c.bf16 %v533, %v533
    %v537 = vunpack.c.l.bf16 %v535
    %v538 = vunpack.c.l.bf16 %v536
    %v539 = vmax.f32 %v537, 0.0
    %v540 = vmax.f32 %v538, 0.0
    %v541 = vpack.c.bf16 %v540, %v539
    %s542 = scalar_lea.vmem [#allocation6], 128
    %v543 = vld [vmem:[%s542] sm:$0xf]
    %v544 = vld [vmem:[%s542 + $0x4] sm:$0xf]
    %v545 = vld [vmem:[%s542 + $0x8] sm:$0xf]
    %v546 = vld [vmem:[%s542 + $0xc] sm:$0xf]
    %v547 = vld [vmem:[%s542 + $0x10] sm:$0xf]
    %v548 = vld [vmem:[%s542 + $0x14] sm:$0xf]
    %v549 = vld [vmem:[%s542 + $0x18] sm:$0xf]
    %v550 = vld [vmem:[%s542 + $0x1c] sm:$0xf]
    %v551 = vld [vmem:[%s542 + $0x20] sm:$0xf]
    %v552 = vld [vmem:[%s542 + $0x24] sm:$0xf]
    %v553 = vld [vmem:[%s542 + $0x28] sm:$0xf]
    %v554 = vld [vmem:[%s542 + $0x2c] sm:$0xf]
    %v555 = vld [vmem:[%s542 + $0x30] sm:$0xf]
    %v556 = vld [vmem:[%s542 + $0x34] sm:$0xf]
    %v557 = vld [vmem:[%s542 + $0x38] sm:$0xf]
    %v558 = vld [vmem:[%s542 + $0x3c] sm:$0xf]
    %v575 = vunpack.c.l.b16 %v543
    %v576 = vunpack.c.l.b16 %v544
    %v577 = vunpack.c.l.b16 %v545
    %v578 = vunpack.c.l.b16 %v546
    %v579 = vunpack.c.l.b16 %v547
    %v580 = vunpack.c.l.b16 %v548
    %v581 = vunpack.c.l.b16 %v549
    %v582 = vunpack.c.l.b16 %v550
    %v583 = vunpack.c.l.b16 %v551
    %v584 = vunpack.c.l.b16 %v552
    %v585 = vunpack.c.l.b16 %v553
    %v586 = vunpack.c.l.b16 %v554
    %v587 = vunpack.c.l.b16 %v555
    %v588 = vunpack.c.l.b16 %v556
    %v589 = vunpack.c.l.b16 %v557
    %v590 = vunpack.c.l.b16 %v558
    %v591 = vpack.c.b16 %v576, %v575
    %v592 = vpack.c.b16 %v578, %v577
    %v593 = vpack.c.b16 %v580, %v579
    %v594 = vpack.c.b16 %v582, %v581
    %v595 = vpack.c.b16 %v584, %v583
    %v596 = vpack.c.b16 %v586, %v585
    %v597 = vpack.c.b16 %v588, %v587
    %v598 = vpack.c.b16 %v590, %v589
    %607 = vmatpush.bf16.msra.mxu0 %v598
    %608 = vmatpush.bf16.msra.mxu0 %v597
    %609 = vmatpush.bf16.msra.mxu0 %v596
    %610 = vmatpush.bf16.msra.mxu0 %v595
    %611 = vmatpush.bf16.msra.mxu0 %v594
    %612 = vmatpush.bf16.msra.mxu0 %v593
    %613 = vmatpush.bf16.msra.mxu0 %v592
    %614 = vmatpush.bf16.msra.mxu0 %v591
    %615 = vmatmul.bf16.gmra.mxu0 %v541
    %v616 = vpop.f32.mrf.mxu0
    %v617 = vadd.f32 0.0, %v616
    %v618 = vpop.f32.mrf.mxu0
    %v619 = vadd.f32 0.0, %v618
    %620 = vdwg.mxu0
    %v621 = vpack.c.bf16 %v617, %v617
    %v622 = vpack.c.bf16 %v619, %v619
    %v623 = vunpack.c.l.bf16 %v621
    %v624 = vunpack.c.l.bf16 %v622
    %v625 = vmax.f32 %v623, 0.0
    %v626 = vmax.f32 %v624, 0.0
    %v627 = vpack.c.bf16 %v626, %v625
    %s628 = scalar_lea.vmem [#allocation6], 192
    %v629 = vld [vmem:[%s628] sm:$0xf]
    %v630 = vld [vmem:[%s628 + $0x4] sm:$0xf]
    %v631 = vld [vmem:[%s628 + $0x8] sm:$0xf]
    %v632 = vld [vmem:[%s628 + $0xc] sm:$0xf]
    %v633 = vld [vmem:[%s628 + $0x10] sm:$0xf]
    %v634 = vld [vmem:[%s628 + $0x14] sm:$0xf]
    %v635 = vld [vmem:[%s628 + $0x18] sm:$0xf]
    %v636 = vld [vmem:[%s628 + $0x1c] sm:$0xf]
    %v637 = vld [vmem:[%s628 + $0x20] sm:$0xf]
    %v638 = vld [vmem:[%s628 + $0x24] sm:$0xf]
    %v639 = vld [vmem:[%s628 + $0x28] sm:$0xf]
    %v640 = vld [vmem:[%s628 + $0x2c] sm:$0xf]
    %v641 = vld [vmem:[%s628 + $0x30] sm:$0xf]
    %v642 = vld [vmem:[%s628 + $0x34] sm:$0xf]
    %v643 = vld [vmem:[%s628 + $0x38] sm:$0xf]
    %v644 = vld [vmem:[%s628 + $0x3c] sm:$0xf]
    %v661 = vunpack.c.l.b16 %v629
    %v662 = vunpack.c.l.b16 %v630
    %v663 = vunpack.c.l.b16 %v631
    %v664 = vunpack.c.l.b16 %v632
    %v665 = vunpack.c.l.b16 %v633
    %v666 = vunpack.c.l.b16 %v634
    %v667 = vunpack.c.l.b16 %v635
    %v668 = vunpack.c.l.b16 %v636
    %v669 = vunpack.c.l.b16 %v637
    %v670 = vunpack.c.l.b16 %v638
    %v671 = vunpack.c.l.b16 %v639
    %v672 = vunpack.c.l.b16 %v640
    %v673 = vunpack.c.l.b16 %v641
    %v674 = vunpack.c.l.b16 %v642
    %v675 = vunpack.c.l.b16 %v643
    %v676 = vunpack.c.l.b16 %v644
    %v677 = vpack.c.b16 %v662, %v661
    %v678 = vpack.c.b16 %v664, %v663
    %v679 = vpack.c.b16 %v666, %v665
    %v680 = vpack.c.b16 %v668, %v667
    %v681 = vpack.c.b16 %v670, %v669
    %v682 = vpack.c.b16 %v672, %v671
    %v683 = vpack.c.b16 %v674, %v673
    %v684 = vpack.c.b16 %v676, %v675
    %693 = vmatpush.bf16.msra.mxu0 %v684
    %694 = vmatpush.bf16.msra.mxu0 %v683
    %695 = vmatpush.bf16.msra.mxu0 %v682
    %696 = vmatpush.bf16.msra.mxu0 %v681
    %697 = vmatpush.bf16.msra.mxu0 %v680
    %698 = vmatpush.bf16.msra.mxu0 %v679
    %699 = vmatpush.bf16.msra.mxu0 %v678
    %700 = vmatpush.bf16.msra.mxu0 %v677
    %701 = vmatmul.bf16.gmra.mxu0 %v627
    %v702 = vpop.f32.mrf.mxu0
    %v703 = vadd.f32 0.0, %v702
    %v704 = vpop.f32.mrf.mxu0
    %v705 = vadd.f32 0.0, %v704
    %706 = vdwg.mxu0
    %v707 = vpack.c.bf16 %v703, %v703
    %v708 = vpack.c.bf16 %v705, %v705
    %v709 = vunpack.c.l.bf16 %v707
    %v710 = vunpack.c.l.bf16 %v708
    %v711 = vmax.f32 %v709, 0.0
    %v712 = vmax.f32 %v710, 0.0
    %v713 = vpack.c.bf16 %v712, %v711
    %s714 = scalar_lea.vmem [#allocation6], 256
    %v715 = vld [vmem:[%s714] sm:$0xf]
    %v716 = vld [vmem:[%s714 + $0x4] sm:$0xf]
    %v717 = vld [vmem:[%s714 + $0x8] sm:$0xf]
    %v718 = vld [vmem:[%s714 + $0xc] sm:$0xf]
    %v719 = vld [vmem:[%s714 + $0x10] sm:$0xf]
    %v720 = vld [vmem:[%s714 + $0x14] sm:$0xf]
    %v721 = vld [vmem:[%s714 + $0x18] sm:$0xf]
    %v722 = vld [vmem:[%s714 + $0x1c] sm:$0xf]
    %v723 = vld [vmem:[%s714 + $0x20] sm:$0xf]
    %v724 = vld [vmem:[%s714 + $0x24] sm:$0xf]
    %v725 = vld [vmem:[%s714 + $0x28] sm:$0xf]
    %v726 = vld [vmem:[%s714 + $0x2c] sm:$0xf]
    %v727 = vld [vmem:[%s714 + $0x30] sm:$0xf]
    %v728 = vld [vmem:[%s714 + $0x34] sm:$0xf]
    %v729 = vld [vmem:[%s714 + $0x38] sm:$0xf]
    %v730 = vld [vmem:[%s714 + $0x3c] sm:$0xf]
    %v747 = vunpack.c.l.b16 %v715
    %v748 = vunpack.c.l.b16 %v716
    %v749 = vunpack.c.l.b16 %v717
    %v750 = vunpack.c.l.b16 %v718
    %v751 = vunpack.c.l.b16 %v719
    %v752 = vunpack.c.l.b16 %v720
    %v753 = vunpack.c.l.b16 %v721
    %v754 = vunpack.c.l.b16 %v722
    %v755 = vunpack.c.l.b16 %v723
    %v756 = vunpack.c.l.b16 %v724
    %v757 = vunpack.c.l.b16 %v725
    %v758 = vunpack.c.l.b16 %v726
    %v759 = vunpack.c.l.b16 %v727
    %v760 = vunpack.c.l.b16 %v728
    %v761 = vunpack.c.l.b16 %v729
    %v762 = vunpack.c.l.b16 %v730
    %v763 = vpack.c.b16 %v748, %v747
    %v764 = vpack.c.b16 %v750, %v749
    %v765 = vpack.c.b16 %v752, %v751
    %v766 = vpack.c.b16 %v754, %v753
    %v767 = vpack.c.b16 %v756, %v755
    %v768 = vpack.c.b16 %v758, %v757
    %v769 = vpack.c.b16 %v760, %v759
    %v770 = vpack.c.b16 %v762, %v761
    %779 = vmatpush.bf16.msra.mxu0 %v770
    %780 = vmatpush.bf16.msra.mxu0 %v769
    %781 = vmatpush.bf16.msra.mxu0 %v768
    %782 = vmatpush.bf16.msra.mxu0 %v767
    %783 = vmatpush.bf16.msra.mxu0 %v766
    %784 = vmatpush.bf16.msra.mxu0 %v765
    %785 = vmatpush.bf16.msra.mxu0 %v764
    %786 = vmatpush.bf16.msra.mxu0 %v763
    %787 = vmatmul.bf16.gmra.mxu0 %v713
    %v788 = vpop.f32.mrf.mxu0
    %v789 = vadd.f32 0.0, %v788
    %v790 = vpop.f32.mrf.mxu0
    %v791 = vadd.f32 0.0, %v790
    %792 = vdwg.mxu0
    %793 = vmax.xlane.f32.xlu0 %v789
    %v794 = vpop.xlane.xlu0 %793
    %795 = vmax.xlane.f32.xlu0 %v791
    %v796 = vpop.xlane.xlu0 %795
    %v797 = vsub.f32 %v789, %v794
    %v798 = vsub.f32 %v791, %v796
    %v799 = vmul.f32 %v797, 1.442695
    %v800 = vpow.pop %v799
    %v801 = vmul.f32 %v798, 1.442695
    %v802 = vpow.pop %v801
    %803 = vadd.xlane.f32.xlu0 %v800
    %v804 = vpop.xlane.xlu0 %803
    %805 = vadd.xlane.f32.xlu0 %v802
    %v806 = vpop.xlane.xlu0 %805
    %v807 = vrcp.pop %v804
    %v808 = vmul.f32 %v804, %v807
    %v809 = vsub.f32 1.0, %v808
    %v810 = vmul.f32 %v807, %v809
    %v811 = vadd.f32 %v807, %v810
    %vm812 = vweird.f32 %v804
    %vm813 = vweird.f32 %v807
    %vm814 = vmor %vm812, %vm813
    %v815 = vsel %vm814, %v807, %v811
    %v816 = vand.u32 2147483647, %v804
    %vm817 = vcmp.eq.f32.partialorder %v816, 8.507059e+37
    %v818 = vand.u32 %v804, 2147483648
    %v819 = vor.u32 1.1754944e-38, %v818
    %v820 = vsel %vm817, %v819, %v815
    %v821 = vrcp.pop %v806
    %v822 = vmul.f32 %v806, %v821
    %v823 = vsub.f32 1.0, %v822
    %v824 = vmul.f32 %v821, %v823
    %v825 = vadd.f32 %v821, %v824
    %vm826 = vweird.f32 %v806
    %vm827 = vweird.f32 %v821
    %vm828 = vmor %vm826, %vm827
    %v829 = vsel %vm828, %v821, %v825
    %v830 = vand.u32 2147483647, %v806
    %vm831 = vcmp.eq.f32.partialorder %v830, 8.507059e+37
    %v832 = vand.u32 %v806, 2147483648
    %v833 = vor.u32 1.1754944e-38, %v832
    %v834 = vsel %vm831, %v833, %v829
    %v835 = vmul.f32 %v800, %v820
    %v836 = vmul.f32 %v802, %v834
    %837 = vst [vmem:[%s4] sm:$0xff] %v835
    %838 = vst [vmem:[%s4 + $0x8] sm:$0xff] %v836
    // Predicated region
    $region30: #{simple_cnn_forward.1} parent=1 // pred_check
      _
    $region31: #{simple_cnn_forward.1} parent=1 // pred_check_branch
      %840 = sbr.rel (0) target = $region33
    $region32: #{simple_cnn_forward.1} parent=1 // pred_region
      _
    $region33: #{simple_cnn_forward.1} parent=1 // pred_fallthru
      _
    // Predicated region
    $region34: #{simple_cnn_forward.1} parent=1 // pred_check
      _
    $region35: #{simple_cnn_forward.1} parent=1 // pred_check_branch
      %842 = sbr.rel (0) target = $region37
    $region36: #{simple_cnn_forward.1} parent=1 // pred_region
      _
    $region37: #{simple_cnn_forward.1} parent=1 // pred_fallthru
      _
    %843 = vsyncpa [#allocation3], 1
    %844 = vsyncpa [#allocation5], 1

</llo_original>
